<compile_context>
chip_gen: v7x
topology: tpu7x:2x2x1
jax: 0.10.0
libtpu: 0.0.40
codegen_flags: <defaults>
</compile_context>

<pallas_src>
import functools

import jax
import jax.numpy as jnp
from jax import lax
from jax.experimental import pallas as pl
from jax.experimental.pallas import tpu as pltpu


def lstm_linear_kernel(x_ref, p_ref, out_ref, *, T, B, BP, H, DP, Dout):
    """LSTM recurrence (gate order [f, i, o, g]) + linear on c_T.

    x_ref  : (T*BP, DP)  time-major input, batch padded to BP=8, feature
                         padded to DP=8 with an all-ones column at index Din
                         (carries the fused bias through the matmul).
    p_ref  : (DP + 2H + 8, 4H) packed parameters:
               rows [0, DP)        W_ih^T (+ bias row), gate-permuted
               rows [DP, DP+H)     W_hh^T, gate-permuted
               rows [DP+H, DP+2H)  Linear weight^T, zero-padded to 4H cols
               rows [DP+2H, ...)   Linear bias (row 0), zero-padded
    out_ref: (B, Dout)
    """
    r_whh = DP
    r_wlin = DP + H
    r_blin = DP + 2 * H

    # Hoisted input projection: one MXU call over all T timesteps; the fused
    # bias rides along via the ones column of x, so no broadcast-add needed.
    gates_x = jnp.dot(x_ref[...], p_ref[0:DP, :],
                      preferred_element_type=jnp.float32)           # (T*BP, 4H)

    whh = p_ref[r_whh:r_whh + H, :]                                  # (H, 4H)

    # Register-carried state; fully unrolled static loop (T is small & static).
    h = jnp.zeros((BP, H), jnp.float32)
    c = jnp.zeros((BP, H), jnp.float32)

    for t in range(T):
        # BP = 8 => this slab is a full, sublane-aligned tile (no XLU shift).
        gates = gates_x[t * BP:(t + 1) * BP, :] + jnp.dot(
            h, whh, preferred_element_type=jnp.float32)              # (BP, 4H)

        # Gate columns pre-permuted to [f, i, o, g]:
        #   one sigmoid over 3H lanes + one tanh over H lanes (2 EUP pushes);
        #   f sits at lane 0, so f*c multiplies with no lane rotate.
        sig = jax.nn.sigmoid(gates[:, :3 * H])
        g_g = jnp.tanh(gates[:, 3 * H:])

        f_g = sig[:, 0 * H:1 * H]
        i_g = sig[:, 1 * H:2 * H]
        o_g = sig[:, 2 * H:3 * H]

        c = f_g * c + i_g * g_g
        h = o_g * jnp.tanh(c)

    # Final linear applied to c_T (matches the PyTorch (h_n, c_n) unpacking).
    logits = (jnp.dot(c, p_ref[r_wlin:r_wlin + H, :],
                      preferred_element_type=jnp.float32)
              + p_ref[r_blin:r_blin + 1, :])                          # (BP, 4H)
    out_ref[...] = logits[0:B, 0:Dout]


def lstm_linear(x_btd, w_ih, w_hh, b_ih, b_hh, w_lin, b_lin):
    """x_btd: (B, T, Din) like PyTorch batch_first input. Returns (B, Dout)."""
    B, T, Din = x_btd.shape
    H = w_hh.shape[1]
    Dout = w_lin.shape[0]
    G = 4 * H
    BP = 8   # batch padded to a full sublane tile
    DP = 8   # input-feature axis padded; column Din carries the bias ones

    # Gate-column permutation: PyTorch [i, f, g, o] -> kernel [f, i, o, g].
    perm = jnp.concatenate([
        jnp.arange(1 * H, 2 * H),   # f
        jnp.arange(0 * H, 1 * H),   # i
        jnp.arange(3 * H, 4 * H),   # o
        jnp.arange(2 * H, 3 * H),   # g
    ])

    # ---- pack ALL parameters into one (DP + 2H + 8, 4H) f32 buffer ----------
    wih_t = jnp.transpose(w_ih).astype(jnp.float32)[:, perm]         # (Din, 4H)
    whh_t = jnp.transpose(w_hh).astype(jnp.float32)[:, perm]         # (H, 4H)
    bias = (b_ih + b_hh).astype(jnp.float32)[perm]                   # (4H,)
    wlin_t = jnp.transpose(w_lin).astype(jnp.float32)                # (H, Dout)
    blin = b_lin.astype(jnp.float32)                                 # (Dout,)

    sec_wih = (jnp.zeros((DP, G), jnp.float32)
               .at[:Din, :].set(wih_t)
               .at[Din, :].set(bias))          # bias row, hit by the ones column
    sec_whh = whh_t                                                  # (H, G)
    sec_wlin = jnp.zeros((H, G), jnp.float32).at[:, :Dout].set(wlin_t)
    sec_blin = jnp.zeros((8, G), jnp.float32).at[0, :Dout].set(blin)
    params = jnp.concatenate([sec_wih, sec_whh, sec_wlin, sec_blin], axis=0)

    # ---- time-major x, batch padded to BP, features padded to DP ------------
    x_tbd = jnp.transpose(x_btd, (1, 0, 2)).astype(jnp.float32)      # (T, B, Din)
    x_pad = (jnp.zeros((T, BP, DP), jnp.float32)
             .at[:, :, Din].set(1.0)                                  # bias ones
             .at[:, :B, :Din].set(x_tbd))
    x_2d = x_pad.reshape(T * BP, DP)                                 # (T*BP, DP)

    kernel = functools.partial(lstm_linear_kernel,
                               T=T, B=B, BP=BP, H=H, DP=DP, Dout=Dout)

    return pl.pallas_call(
        kernel,
        out_shape=jax.ShapeDtypeStruct((B, Dout), jnp.float32),
        in_specs=[pl.BlockSpec(memory_space=pltpu.MemorySpace.VMEM)] * 2,
        out_specs=pl.BlockSpec(memory_space=pltpu.MemorySpace.VMEM),
    )(x_2d, params)


def reference(x_btd, w_ih, w_hh, b_ih, b_hh, w_lin, b_lin):
    """Pure-JAX reference (PyTorch LSTM semantics, gate order i, f, g, o)."""
    B, T, Din = x_btd.shape
    H = w_hh.shape[1]
    x_tbd = jnp.transpose(x_btd, (1, 0, 2))

    def step(carry, x_t):
        h, c = carry
        gates = x_t @ w_ih.T + b_ih + h @ w_hh.T + b_hh
        i = jax.nn.sigmoid(gates[:, 0 * H:1 * H])
        f = jax.nn.sigmoid(gates[:, 1 * H:2 * H])
        g = jnp.tanh(gates[:, 2 * H:3 * H])
        o = jax.nn.sigmoid(gates[:, 3 * H:4 * H])
        c_new = f * c + i * g
        h_new = o * jnp.tanh(c_new)
        return (h_new, c_new), None

    h0 = jnp.zeros((B, H), jnp.float32)
    c0 = jnp.zeros((B, H), jnp.float32)
    (h_T, c_T), _ = lax.scan(step, (h0, c0), x_tbd)
    # The PyTorch code applies the Linear to c_n (mis-named h0 there).
    return c_T @ w_lin.T + b_lin


if __name__ == "__main__":
    B, T, Din, H, Dout = 2, 8, 4, 32, 2

    key = jax.random.PRNGKey(0)
    ks = jax.random.split(key, 8)
    scale = 1.0 / jnp.sqrt(H)

    x = jax.random.normal(ks[0], (B, T, Din), jnp.float32)
    w_ih = jax.random.uniform(ks[1], (4 * H, Din), jnp.float32, -scale, scale)
    w_hh = jax.random.uniform(ks[2], (4 * H, H), jnp.float32, -scale, scale)
    b_ih = jax.random.uniform(ks[3], (4 * H,), jnp.float32, -scale, scale)
    b_hh = jax.random.uniform(ks[4], (4 * H,), jnp.float32, -scale, scale)
    w_lin = jax.random.uniform(ks[5], (Dout, H), jnp.float32, -scale, scale)
    b_lin = jax.random.uniform(ks[6], (Dout,), jnp.float32, -scale, scale)

    out = lstm_linear(x, w_ih, w_hh, b_ih, b_hh, w_lin, b_lin)
    out = jax.block_until_ready(out)

    ref = reference(x, w_ih, w_hh, b_ih, b_hh, w_lin, b_lin)
    assert out.shape == (B, Dout)
    assert jnp.allclose(out, ref, atol=1e-5, rtol=1e-5), (out, ref)

    print("KERNEL_OK")
</pallas_src>

<mosaic_0001>
module attributes {stable_mosaic.version = 11 : i64} {
  func.func @lstm_linear_kernel(%arg0: memref<64x8xf32, #tpu.memory_space<vmem>>, %arg1: memref<80x128xf32, #tpu.memory_space<vmem>>, %arg2: memref<2x2xf32, #tpu.memory_space<vmem>>) attributes {dimension_semantics = [], scalar_prefetch = 0 : i64, scratch_operands = 0 : i64, tpu.core_type = #tpu.core_type<tc>} {
    %c0 = arith.constant 0 : index
    %c0_0 = arith.constant 0 : index
    %0 = vector.load %arg0[%c0, %c0_0] : memref<64x8xf32, #tpu.memory_space<vmem>>, vector<64x8xf32>
    %c0_1 = arith.constant 0 : index
    %c0_2 = arith.constant 0 : index
    %1 = vector.load %arg1[%c0_1, %c0_2] : memref<80x128xf32, #tpu.memory_space<vmem>>, vector<8x128xf32>
    %cst = arith.constant dense<0.000000e+00> : vector<64x128xf32>
    %2 = tpu.matmul %0, %1, %cst {dimension_numbers = #tpu.dot_dimension_numbers<[1], [0], [0], [1], [0, 0, 1, 1], [], []>} : vector<64x8xf32>, vector<8x128xf32>, vector<64x128xf32> -> vector<64x128xf32>
    %c8 = arith.constant 8 : index
    %c0_3 = arith.constant 0 : index
    %3 = vector.load %arg1[%c8, %c0_3] : memref<80x128xf32, #tpu.memory_space<vmem>>, vector<32x128xf32>
    %cst_4 = arith.constant 0.000000e+00 : f32
    %4 = vector.broadcast %cst_4 : f32 to vector<8x32xf32>
    %cst_5 = arith.constant 0.000000e+00 : f32
    %5 = vector.broadcast %cst_5 : f32 to vector<8x32xf32>
    %6 = vector.extract_strided_slice %2 {offsets = [0, 0], sizes = [8, 128], strides = [1, 1]} : vector<64x128xf32> to vector<8x128xf32>
    %cst_6 = arith.constant dense<0.000000e+00> : vector<8x128xf32>
    %7 = tpu.matmul %4, %3, %cst_6 {dimension_numbers = #tpu.dot_dimension_numbers<[1], [0], [0], [1], [0, 0, 1, 1], [], []>} : vector<8x32xf32>, vector<32x128xf32>, vector<8x128xf32> -> vector<8x128xf32>
    %8 = arith.addf %6, %7 : vector<8x128xf32>
    %9 = vector.extract_strided_slice %8 {offsets = [0, 0], sizes = [8, 96], strides = [1, 1]} : vector<8x128xf32> to vector<8x96xf32>
    %10 = arith.negf %9 : vector<8x96xf32>
    %11 = math.exp %10 : vector<8x96xf32>
    %cst_7 = arith.constant 1.000000e+00 : f32
    %12 = vector.broadcast %cst_7 : f32 to vector<8x96xf32>
    %13 = arith.addf %12, %11 : vector<8x96xf32>
    %14 = arith.divf %12, %13 : vector<8x96xf32>
    %15 = vector.extract_strided_slice %8 {offsets = [0, 96], sizes = [8, 32], strides = [1, 1]} : vector<8x128xf32> to vector<8x32xf32>
    %16 = math.tanh %15 : vector<8x32xf32>
    %17 = vector.extract_strided_slice %14 {offsets = [0, 0], sizes = [8, 32], strides = [1, 1]} : vector<8x96xf32> to vector<8x32xf32>
    %18 = vector.extract_strided_slice %14 {offsets = [0, 32], sizes = [8, 32], strides = [1, 1]} : vector<8x96xf32> to vector<8x32xf32>
    %19 = vector.extract_strided_slice %14 {offsets = [0, 64], sizes = [8, 32], strides = [1, 1]} : vector<8x96xf32> to vector<8x32xf32>
    %20 = arith.mulf %17, %5 : vector<8x32xf32>
    %21 = arith.mulf %18, %16 : vector<8x32xf32>
    %22 = arith.addf %20, %21 : vector<8x32xf32>
    %23 = math.tanh %22 : vector<8x32xf32>
    %24 = arith.mulf %19, %23 : vector<8x32xf32>
    %25 = vector.extract_strided_slice %2 {offsets = [8, 0], sizes = [8, 128], strides = [1, 1]} : vector<64x128xf32> to vector<8x128xf32>
    %cst_8 = arith.constant dense<0.000000e+00> : vector<8x128xf32>
    %26 = tpu.matmul %24, %3, %cst_8 {dimension_numbers = #tpu.dot_dimension_numbers<[1], [0], [0], [1], [0, 0, 1, 1], [], []>} : vector<8x32xf32>, vector<32x128xf32>, vector<8x128xf32> -> vector<8x128xf32>
    %27 = arith.addf %25, %26 : vector<8x128xf32>
    %28 = vector.extract_strided_slice %27 {offsets = [0, 0], sizes = [8, 96], strides = [1, 1]} : vector<8x128xf32> to vector<8x96xf32>
    %29 = arith.negf %28 : vector<8x96xf32>
    %30 = math.exp %29 : vector<8x96xf32>
    %cst_9 = arith.constant 1.000000e+00 : f32
    %31 = vector.broadcast %cst_9 : f32 to vector<8x96xf32>
    %32 = arith.addf %31, %30 : vector<8x96xf32>
    %33 = arith.divf %31, %32 : vector<8x96xf32>
    %34 = vector.extract_strided_slice %27 {offsets = [0, 96], sizes = [8, 32], strides = [1, 1]} : vector<8x128xf32> to vector<8x32xf32>
    %35 = math.tanh %34 : vector<8x32xf32>
    %36 = vector.extract_strided_slice %33 {offsets = [0, 0], sizes = [8, 32], strides = [1, 1]} : vector<8x96xf32> to vector<8x32xf32>
    %37 = vector.extract_strided_slice %33 {offsets = [0, 32], sizes = [8, 32], strides = [1, 1]} : vector<8x96xf32> to vector<8x32xf32>
    %38 = vector.extract_strided_slice %33 {offsets = [0, 64], sizes = [8, 32], strides = [1, 1]} : vector<8x96xf32> to vector<8x32xf32>
    %39 = arith.mulf %36, %22 : vector<8x32xf32>
    %40 = arith.mulf %37, %35 : vector<8x32xf32>
    %41 = arith.addf %39, %40 : vector<8x32xf32>
    %42 = math.tanh %41 : vector<8x32xf32>
    %43 = arith.mulf %38, %42 : vector<8x32xf32>
    %44 = vector.extract_strided_slice %2 {offsets = [16, 0], sizes = [8, 128], strides = [1, 1]} : vector<64x128xf32> to vector<8x128xf32>
    %cst_10 = arith.constant dense<0.000000e+00> : vector<8x128xf32>
    %45 = tpu.matmul %43, %3, %cst_10 {dimension_numbers = #tpu.dot_dimension_numbers<[1], [0], [0], [1], [0, 0, 1, 1], [], []>} : vector<8x32xf32>, vector<32x128xf32>, vector<8x128xf32> -> vector<8x128xf32>
    %46 = arith.addf %44, %45 : vector<8x128xf32>
    %47 = vector.extract_strided_slice %46 {offsets = [0, 0], sizes = [8, 96], strides = [1, 1]} : vector<8x128xf32> to vector<8x96xf32>
    %48 = arith.negf %47 : vector<8x96xf32>
    %49 = math.exp %48 : vector<8x96xf32>
    %cst_11 = arith.constant 1.000000e+00 : f32
    %50 = vector.broadcast %cst_11 : f32 to vector<8x96xf32>
    %51 = arith.addf %50, %49 : vector<8x96xf32>
    %52 = arith.divf %50, %51 : vector<8x96xf32>
    %53 = vector.extract_strided_slice %46 {offsets = [0, 96], sizes = [8, 32], strides = [1, 1]} : vector<8x128xf32> to vector<8x32xf32>
    %54 = math.tanh %53 : vector<8x32xf32>
    %55 = vector.extract_strided_slice %52 {offsets = [0, 0], sizes = [8, 32], strides = [1, 1]} : vector<8x96xf32> to vector<8x32xf32>
    %56 = vector.extract_strided_slice %52 {offsets = [0, 32], sizes = [8, 32], strides = [1, 1]} : vector<8x96xf32> to vector<8x32xf32>
    %57 = vector.extract_strided_slice %52 {offsets = [0, 64], sizes = [8, 32], strides = [1, 1]} : vector<8x96xf32> to vector<8x32xf32>
    %58 = arith.mulf %55, %41 : vector<8x32xf32>
    %59 = arith.mulf %56, %54 : vector<8x32xf32>
    %60 = arith.addf %58, %59 : vector<8x32xf32>
    %61 = math.tanh %60 : vector<8x32xf32>
    %62 = arith.mulf %57, %61 : vector<8x32xf32>
    %63 = vector.extract_strided_slice %2 {offsets = [24, 0], sizes = [8, 128], strides = [1, 1]} : vector<64x128xf32> to vector<8x128xf32>
    %cst_12 = arith.constant dense<0.000000e+00> : vector<8x128xf32>
    %64 = tpu.matmul %62, %3, %cst_12 {dimension_numbers = #tpu.dot_dimension_numbers<[1], [0], [0], [1], [0, 0, 1, 1], [], []>} : vector<8x32xf32>, vector<32x128xf32>, vector<8x128xf32> -> vector<8x128xf32>
    %65 = arith.addf %63, %64 : vector<8x128xf32>
    %66 = vector.extract_strided_slice %65 {offsets = [0, 0], sizes = [8, 96], strides = [1, 1]} : vector<8x128xf32> to vector<8x96xf32>
    %67 = arith.negf %66 : vector<8x96xf32>
    %68 = math.exp %67 : vector<8x96xf32>
    %cst_13 = arith.constant 1.000000e+00 : f32
    %69 = vector.broadcast %cst_13 : f32 to vector<8x96xf32>
    %70 = arith.addf %69, %68 : vector<8x96xf32>
    %71 = arith.divf %69, %70 : vector<8x96xf32>
    %72 = vector.extract_strided_slice %65 {offsets = [0, 96], sizes = [8, 32], strides = [1, 1]} : vector<8x128xf32> to vector<8x32xf32>
    %73 = math.tanh %72 : vector<8x32xf32>
    %74 = vector.extract_strided_slice %71 {offsets = [0, 0], sizes = [8, 32], strides = [1, 1]} : vector<8x96xf32> to vector<8x32xf32>
    %75 = vector.extract_strided_slice %71 {offsets = [0, 32], sizes = [8, 32], strides = [1, 1]} : vector<8x96xf32> to vector<8x32xf32>
    %76 = vector.extract_strided_slice %71 {offsets = [0, 64], sizes = [8, 32], strides = [1, 1]} : vector<8x96xf32> to vector<8x32xf32>
    %77 = arith.mulf %74, %60 : vector<8x32xf32>
    %78 = arith.mulf %75, %73 : vector<8x32xf32>
    %79 = arith.addf %77, %78 : vector<8x32xf32>
    %80 = math.tanh %79 : vector<8x32xf32>
    %81 = arith.mulf %76, %80 : vector<8x32xf32>
    %82 = vector.extract_strided_slice %2 {offsets = [32, 0], sizes = [8, 128], strides = [1, 1]} : vector<64x128xf32> to vector<8x128xf32>
    %cst_14 = arith.constant dense<0.000000e+00> : vector<8x128xf32>
    %83 = tpu.matmul %81, %3, %cst_14 {dimension_numbers = #tpu.dot_dimension_numbers<[1], [0], [0], [1], [0, 0, 1, 1], [], []>} : vector<8x32xf32>, vector<32x128xf32>, vector<8x128xf32> -> vector<8x128xf32>
    %84 = arith.addf %82, %83 : vector<8x128xf32>
    %85 = vector.extract_strided_slice %84 {offsets = [0, 0], sizes = [8, 96], strides = [1, 1]} : vector<8x128xf32> to vector<8x96xf32>
    %86 = arith.negf %85 : vector<8x96xf32>
    %87 = math.exp %86 : vector<8x96xf32>
    %cst_15 = arith.constant 1.000000e+00 : f32
    %88 = vector.broadcast %cst_15 : f32 to vector<8x96xf32>
    %89 = arith.addf %88, %87 : vector<8x96xf32>
    %90 = arith.divf %88, %89 : vector<8x96xf32>
    %91 = vector.extract_strided_slice %84 {offsets = [0, 96], sizes = [8, 32], strides = [1, 1]} : vector<8x128xf32> to vector<8x32xf32>
    %92 = math.tanh %91 : vector<8x32xf32>
    %93 = vector.extract_strided_slice %90 {offsets = [0, 0], sizes = [8, 32], strides = [1, 1]} : vector<8x96xf32> to vector<8x32xf32>
    %94 = vector.extract_strided_slice %90 {offsets = [0, 32], sizes = [8, 32], strides = [1, 1]} : vector<8x96xf32> to vector<8x32xf32>
    %95 = vector.extract_strided_slice %90 {offsets = [0, 64], sizes = [8, 32], strides = [1, 1]} : vector<8x96xf32> to vector<8x32xf32>
    %96 = arith.mulf %93, %79 : vector<8x32xf32>
    %97 = arith.mulf %94, %92 : vector<8x32xf32>
    %98 = arith.addf %96, %97 : vector<8x32xf32>
    %99 = math.tanh %98 : vector<8x32xf32>
    %100 = arith.mulf %95, %99 : vector<8x32xf32>
    %101 = vector.extract_strided_slice %2 {offsets = [40, 0], sizes = [8, 128], strides = [1, 1]} : vector<64x128xf32> to vector<8x128xf32>
    %cst_16 = arith.constant dense<0.000000e+00> : vector<8x128xf32>
    %102 = tpu.matmul %100, %3, %cst_16 {dimension_numbers = #tpu.dot_dimension_numbers<[1], [0], [0], [1], [0, 0, 1, 1], [], []>} : vector<8x32xf32>, vector<32x128xf32>, vector<8x128xf32> -> vector<8x128xf32>
    %103 = arith.addf %101, %102 : vector<8x128xf32>
    %104 = vector.extract_strided_slice %103 {offsets = [0, 0], sizes = [8, 96], strides = [1, 1]} : vector<8x128xf32> to vector<8x96xf32>
    %105 = arith.negf %104 : vector<8x96xf32>
    %106 = math.exp %105 : vector<8x96xf32>
    %cst_17 = arith.constant 1.000000e+00 : f32
    %107 = vector.broadcast %cst_17 : f32 to vector<8x96xf32>
    %108 = arith.addf %107, %106 : vector<8x96xf32>
    %109 = arith.divf %107, %108 : vector<8x96xf32>
    %110 = vector.extract_strided_slice %103 {offsets = [0, 96], sizes = [8, 32], strides = [1, 1]} : vector<8x128xf32> to vector<8x32xf32>
    %111 = math.tanh %110 : vector<8x32xf32>
    %112 = vector.extract_strided_slice %109 {offsets = [0, 0], sizes = [8, 32], strides = [1, 1]} : vector<8x96xf32> to vector<8x32xf32>
    %113 = vector.extract_strided_slice %109 {offsets = [0, 32], sizes = [8, 32], strides = [1, 1]} : vector<8x96xf32> to vector<8x32xf32>
    %114 = vector.extract_strided_slice %109 {offsets = [0, 64], sizes = [8, 32], strides = [1, 1]} : vector<8x96xf32> to vector<8x32xf32>
    %115 = arith.mulf %112, %98 : vector<8x32xf32>
    %116 = arith.mulf %113, %111 : vector<8x32xf32>
    %117 = arith.addf %115, %116 : vector<8x32xf32>
    %118 = math.tanh %117 : vector<8x32xf32>
    %119 = arith.mulf %114, %118 : vector<8x32xf32>
    %120 = vector.extract_strided_slice %2 {offsets = [48, 0], sizes = [8, 128], strides = [1, 1]} : vector<64x128xf32> to vector<8x128xf32>
    %cst_18 = arith.constant dense<0.000000e+00> : vector<8x128xf32>
    %121 = tpu.matmul %119, %3, %cst_18 {dimension_numbers = #tpu.dot_dimension_numbers<[1], [0], [0], [1], [0, 0, 1, 1], [], []>} : vector<8x32xf32>, vector<32x128xf32>, vector<8x128xf32> -> vector<8x128xf32>
    %122 = arith.addf %120, %121 : vector<8x128xf32>
    %123 = vector.extract_strided_slice %122 {offsets = [0, 0], sizes = [8, 96], strides = [1, 1]} : vector<8x128xf32> to vector<8x96xf32>
    %124 = arith.negf %123 : vector<8x96xf32>
    %125 = math.exp %124 : vector<8x96xf32>
    %cst_19 = arith.constant 1.000000e+00 : f32
    %126 = vector.broadcast %cst_19 : f32 to vector<8x96xf32>
    %127 = arith.addf %126, %125 : vector<8x96xf32>
    %128 = arith.divf %126, %127 : vector<8x96xf32>
    %129 = vector.extract_strided_slice %122 {offsets = [0, 96], sizes = [8, 32], strides = [1, 1]} : vector<8x128xf32> to vector<8x32xf32>
    %130 = math.tanh %129 : vector<8x32xf32>
    %131 = vector.extract_strided_slice %128 {offsets = [0, 0], sizes = [8, 32], strides = [1, 1]} : vector<8x96xf32> to vector<8x32xf32>
    %132 = vector.extract_strided_slice %128 {offsets = [0, 32], sizes = [8, 32], strides = [1, 1]} : vector<8x96xf32> to vector<8x32xf32>
    %133 = vector.extract_strided_slice %128 {offsets = [0, 64], sizes = [8, 32], strides = [1, 1]} : vector<8x96xf32> to vector<8x32xf32>
    %134 = arith.mulf %131, %117 : vector<8x32xf32>
    %135 = arith.mulf %132, %130 : vector<8x32xf32>
    %136 = arith.addf %134, %135 : vector<8x32xf32>
    %137 = math.tanh %136 : vector<8x32xf32>
    %138 = arith.mulf %133, %137 : vector<8x32xf32>
    %139 = vector.extract_strided_slice %2 {offsets = [56, 0], sizes = [8, 128], strides = [1, 1]} : vector<64x128xf32> to vector<8x128xf32>
    %cst_20 = arith.constant dense<0.000000e+00> : vector<8x128xf32>
    %140 = tpu.matmul %138, %3, %cst_20 {dimension_numbers = #tpu.dot_dimension_numbers<[1], [0], [0], [1], [0, 0, 1, 1], [], []>} : vector<8x32xf32>, vector<32x128xf32>, vector<8x128xf32> -> vector<8x128xf32>
    %141 = arith.addf %139, %140 : vector<8x128xf32>
    %142 = vector.extract_strided_slice %141 {offsets = [0, 0], sizes = [8, 96], strides = [1, 1]} : vector<8x128xf32> to vector<8x96xf32>
    %143 = arith.negf %142 : vector<8x96xf32>
    %144 = math.exp %143 : vector<8x96xf32>
    %cst_21 = arith.constant 1.000000e+00 : f32
    %145 = vector.broadcast %cst_21 : f32 to vector<8x96xf32>
    %146 = arith.addf %145, %144 : vector<8x96xf32>
    %147 = arith.divf %145, %146 : vector<8x96xf32>
    %148 = vector.extract_strided_slice %141 {offsets = [0, 96], sizes = [8, 32], strides = [1, 1]} : vector<8x128xf32> to vector<8x32xf32>
    %149 = math.tanh %148 : vector<8x32xf32>
    %150 = vector.extract_strided_slice %147 {offsets = [0, 0], sizes = [8, 32], strides = [1, 1]} : vector<8x96xf32> to vector<8x32xf32>
    %151 = vector.extract_strided_slice %147 {offsets = [0, 32], sizes = [8, 32], strides = [1, 1]} : vector<8x96xf32> to vector<8x32xf32>
    %152 = arith.mulf %150, %136 : vector<8x32xf32>
    %153 = arith.mulf %151, %149 : vector<8x32xf32>
    %154 = arith.addf %152, %153 : vector<8x32xf32>
    %c40 = arith.constant 40 : index
    %c0_22 = arith.constant 0 : index
    %155 = vector.load %arg1[%c40, %c0_22] : memref<80x128xf32, #tpu.memory_space<vmem>>, vector<32x128xf32>
    %cst_23 = arith.constant dense<0.000000e+00> : vector<8x128xf32>
    %156 = tpu.matmul %154, %155, %cst_23 {dimension_numbers = #tpu.dot_dimension_numbers<[1], [0], [0], [1], [0, 0, 1, 1], [], []>} : vector<8x32xf32>, vector<32x128xf32>, vector<8x128xf32> -> vector<8x128xf32>
    %c72 = arith.constant 72 : index
    %c0_24 = arith.constant 0 : index
    %157 = vector.load %arg1[%c72, %c0_24] : memref<80x128xf32, #tpu.memory_space<vmem>>, vector<1x128xf32>
    %158 = vector.broadcast %157 : vector<1x128xf32> to vector<8x128xf32>
    %159 = arith.addf %156, %158 : vector<8x128xf32>
    %160 = vector.extract_strided_slice %159 {offsets = [0, 0], sizes = [2, 2], strides = [1, 1]} : vector<8x128xf32> to vector<2x2xf32>
    %c0_25 = arith.constant 0 : index
    %c0_26 = arith.constant 0 : index
    %161 = vector.load %arg2[%c0_25, %c0_26] : memref<2x2xf32, #tpu.memory_space<vmem>>, vector<2x2xf32>
    tpu.vector_store %arg2[%c0_25, %c0_26], %160 {strides = array<i32>} : memref<2x2xf32, #tpu.memory_space<vmem>>, vector<2x2xf32>,
    return
  }
}

</mosaic_0001>

<llo_original>
// kernel: tpu_custom_call.1
$region0: #{tpu_custom_call.1}
  #allocation0 [shape = 'u32[]', space=smem, size = 0x4, offset = 0x4, fixed_abs, tag = 'smem constant byte address 0x4 - core index']
  #allocation1 [shape = 'u32[144,128]{1,0:T(1,128)}', space=vmem, size = 0x12000, scoped, tag = 'internal scratch']
  %s0 = inlined_call_operand.vmem [shape: f32[64,8], index: 0, kind: input, shape index: {}]
  %s1 = inlined_call_operand.hbm [shape: f32[80,128], index: 1, kind: input, shape index: {}]
  %s2 = inlined_call_operand.hbm [shape: f32[2,2], index: 2, kind: output, shape index: {}]
  %s3 = sld [smem:[#allocation0]]
  $region22: #{tpu_custom_call.1} parent=0
    _
  %s5 = ssub.s32 1, %s3
  %s6 = scalar_select 0, %s5, %s3
  $region1: #{tpu_custom_call.1} parent=0
    #allocation2 [shape = 'u8[40960]{0}', space=vmem, size = 0xa000, scoped, tag = 'input window, operand 1, single buffered']
    #allocation3 [shape = 's32[1]{0}', space=sflag, size = 0x4, scoped, tag = 'scoped memory for tpu_custom_call.1']
    #allocation4 [shape = 's32[1]{0}', space=sflag, size = 0x4, scoped, tag = 'scoped memory for tpu_custom_call.1']
    #allocation5 [shape = 'u8[1024]{0}', space=vmem, size = 0x400, scoped, tag = 'output window, operand 0, single buffered']
    %7 = vsyncpa [#allocation3], 0
    %8 = vsyncpa [#allocation4], 0
    // Predicated region
    $region2: #{tpu_custom_call.1} parent=1 // pred_check
      _
    $region3: #{tpu_custom_call.1} parent=1 // pred_check_branch
      %10 = sbr.rel (0) target = $region5
    $region4: #{tpu_custom_call.1} parent=1 // pred_region
      _
    $region5: #{tpu_custom_call.1} parent=1 // pred_fallthru
      _
    // Predicated region
    $region6: #{tpu_custom_call.1} parent=1 // pred_check
      _
    $region7: #{tpu_custom_call.1} parent=1 // pred_check_branch
      %12 = sbr.rel (0) target = $region9
    $region8: #{tpu_custom_call.1} parent=1 // pred_region
      %s14 = ssub.s32 1280, 1280
      %15 = vsyncadd [#allocation3], %s14
      %s16 = sshll.u32 [#allocation2], 4
      %s17 = int_to_ptr.vmem [resolvable:$true] %s16
      %22 = dma.hbm_to_vmem [thread:$0]  %s1, 1280, %s17, [#allocation3], 128, 128, 8
    $region9: #{tpu_custom_call.1} parent=1 // pred_fallthru
      _
    // Predicated region
    $region10: #{tpu_custom_call.1} parent=1 // pred_check
      _
    $region11: #{tpu_custom_call.1} parent=1 // pred_check_branch
      %24 = sbr.rel (0) target = $region13
    $region12: #{tpu_custom_call.1} parent=1 // pred_region
      %25 = dma.done [#allocation3], 1280
    $region13: #{tpu_custom_call.1} parent=1 // pred_fallthru
      _
    %v26 = vld [vmem:[%s0] sm:$0xff]
    %v27 = vld [vmem:[%s0 + $0x8] sm:$0xff]
    %v28 = vld [vmem:[%s0 + $0x10] sm:$0xff]
    %v29 = vld [vmem:[%s0 + $0x18] sm:$0xff]
    %v30 = vld [vmem:[%s0 + $0x20] sm:$0xff]
    %v31 = vld [vmem:[%s0 + $0x28] sm:$0xff]
    %v32 = vld [vmem:[%s0 + $0x30] sm:$0xff]
    %v33 = vld [vmem:[%s0 + $0x38] sm:$0xff]
    %v34 = vld [vmem:[#allocation2] sm:$0xff]
    %vm35 = vcmask 64512
    %v37 = vsel %vm35, %v26, 0
    %v40 = vsel %vm35, %v27, 0
    %v43 = vsel %vm35, %v28, 0
    %v46 = vsel %vm35, %v29, 0
    %v49 = vsel %vm35, %v30, 0
    %v52 = vsel %vm35, %v31, 0
    %v55 = vsel %vm35, %v32, 0
    %v58 = vsel %vm35, %v33, 0
    %60 = vmatprep.subr.mxu0 0.0
    %61 = vmatpush1.msra.mxu0 %v34
    %62 = vmatprep.subr.mxu0 0.0
    %63 = vmatpush1.msra.mxu0 0.0
    %64 = vmatprep.subr.mxu0 0.0
    %65 = vmatpush1.msra.mxu0 0.0
    %66 = vmatprep.subr.mxu0 0.0
    %67 = vmatpush1.msra.mxu0 0.0
    %68 = vmatprep.subr.mxu0 0.0
    %69 = vmatpush1.msra.mxu0 0.0
    %70 = vmatprep.subr.mxu0 0.0
    %71 = vmatpush1.msra.mxu0 0.0
    %72 = vmatprep.subr.mxu0 0.0
    %73 = vmatpush1.msra.mxu0 0.0
    %74 = vmatprep.subr.mxu0 0.0
    %75 = vmatpush1.msra.mxu0 0.0
    %76 = vmatprep.subr.mxu0 0.0
    %77 = vmatpush1.msra.mxu0 0.0
    %78 = vmatprep.subr.mxu0 0.0
    %79 = vmatpush1.msra.mxu0 0.0
    %80 = vmatprep.subr.mxu0 0.0
    %81 = vmatpush1.msra.mxu0 0.0
    %82 = vmatprep.subr.mxu0 0.0
    %83 = vmatpush1.msra.mxu0 0.0
    %84 = vmatprep.subr.mxu0 0.0
    %85 = vmatpush1.msra.mxu0 0.0
    %86 = vmatprep.subr.mxu0 0.0
    %87 = vmatpush1.msra.mxu0 0.0
    %88 = vmatprep.subr.mxu0 0.0
    %89 = vmatpush1.msra.mxu0 0.0
    %90 = vmatprep.subr.mxu0 0.0
    %91 = vmatpush1.msra.mxu0 0.0
    %92 = vmatprep.subr.mxu0 0.0
    %93 = vmatpush1.msra.mxu0 0.0
    %94 = vmatprep.subr.mxu0 0.0
    %95 = vmatpush1.msra.mxu0 0.0
    %96 = vmatprep.subr.mxu0 0.0
    %97 = vmatpush1.msra.mxu0 0.0
    %98 = vmatprep.subr.mxu0 0.0
    %99 = vmatpush1.msra.mxu0 0.0
    %100 = vmatprep.subr.mxu0 0.0
    %101 = vmatpush1.msra.mxu0 0.0
    %102 = vmatprep.subr.mxu0 0.0
    %103 = vmatpush1.msra.mxu0 0.0
    %104 = vmatprep.subr.mxu0 0.0
    %105 = vmatpush1.msra.mxu0 0.0
    %106 = vmatprep.subr.mxu0 0.0
    %107 = vmatpush1.msra.mxu0 0.0
    %108 = vmatprep.subr.mxu0 0.0
    %109 = vmatpush1.msra.mxu0 0.0
    %110 = vmatprep.subr.mxu0 0.0
    %111 = vmatpush1.msra.mxu0 0.0
    %112 = vmatprep.subr.mxu0 0.0
    %113 = vmatpush1.msra.mxu0 0.0
    %114 = vmatprep.subr.mxu0 0.0
    %115 = vmatpush1.msra.mxu0 0.0
    %116 = vmatprep.subr.mxu0 0.0
    %117 = vmatpush1.msra.mxu0 0.0
    %118 = vmatprep.subr.mxu0 0.0
    %119 = vmatpush1.msra.mxu0 0.0
    %120 = vmatprep.subr.mxu0 0.0
    %121 = vmatpush1.msra.mxu0 0.0
    %122 = vmatprep.subr.mxu0 0.0
    %123 = vmatpush1.msra.mxu0 0.0
    %124 = vmatprep.mubr.f32.mxu0 0.0
    %125 = vmatmul.mubr.f32.gmra.mrb[0].mxu0 %v37
    %v126 = vpop.f32.mrb[0].mxu0
    %v127 = vadd.f32 0.0, %v126
    %v128 = vpop.f32.mrb[0].mxu0
    %129 = vmatprep.mubr.f32.mxu0 0.0
    %130 = vmatmul.mubr.f32.gmra.mrb[0].mxu0 %v40
    %v131 = vpop.f32.mrb[0].mxu0
    %v132 = vadd.f32 0.0, %v131
    %v133 = vpop.f32.mrb[0].mxu0
    %134 = vmatprep.mubr.f32.mxu0 0.0
    %135 = vmatmul.mubr.f32.gmra.mrb[0].mxu0 %v43
    %v136 = vpop.f32.mrb[0].mxu0
    %v137 = vadd.f32 0.0, %v136
    %v138 = vpop.f32.mrb[0].mxu0
    %139 = vmatprep.mubr.f32.mxu0 0.0
    %140 = vmatmul.mubr.f32.gmra.mrb[0].mxu0 %v46
    %v141 = vpop.f32.mrb[0].mxu0
    %v142 = vadd.f32 0.0, %v141
    %v143 = vpop.f32.mrb[0].mxu0
    %144 = vmatprep.mubr.f32.mxu0 0.0
    %145 = vmatmul.mubr.f32.gmra.mrb[0].mxu0 %v49
    %v146 = vpop.f32.mrb[0].mxu0
    %v147 = vadd.f32 0.0, %v146
    %v148 = vpop.f32.mrb[0].mxu0
    %149 = vmatprep.mubr.f32.mxu0 0.0
    %150 = vmatmul.mubr.f32.gmra.mrb[0].mxu0 %v52
    %v151 = vpop.f32.mrb[0].mxu0
    %v152 = vadd.f32 0.0, %v151
    %v153 = vpop.f32.mrb[0].mxu0
    %154 = vmatprep.mubr.f32.mxu0 0.0
    %155 = vmatmul.mubr.f32.gmra.mrb[0].mxu0 %v55
    %v156 = vpop.f32.mrb[0].mxu0
    %v157 = vadd.f32 0.0, %v156
    %v158 = vpop.f32.mrb[0].mxu0
    %159 = vmatprep.mubr.f32.mxu0 0.0
    %160 = vmatmul.mubr.f32.gmra.mrb[0].mxu0 %v58
    %v161 = vpop.f32.mrb[0].mxu0
    %v162 = vadd.f32 0.0, %v161
    %v163 = vpop.f32.mrb[0].mxu0
    %164 = vdwg.mxu0
    %v165 = vld [vmem:[#allocation2 + $0x8] sm:$0xff]
    %v166 = vld [vmem:[#allocation2 + $0x10] sm:$0xff]
    %v167 = vld [vmem:[#allocation2 + $0x18] sm:$0xff]
    %v168 = vld [vmem:[#allocation2 + $0x20] sm:$0xff]
    %vm169 = vcmask 261120
    %v171 = vsel %vm169, 0.0, 0
    %173 = vmatprep.subr.mxu0 0.0
    %174 = vmatpush1.msra.mxu0 %v165
    %175 = vmatprep.subr.mxu0 0.0
    %176 = vmatpush1.msra.mxu0 %v166
    %177 = vmatprep.subr.mxu0 0.0
    %178 = vmatpush1.msra.mxu0 %v167
    %179 = vmatprep.subr.mxu0 0.0
    %180 = vmatpush1.msra.mxu0 %v168
    %181 = vmatprep.subr.mxu0 0.0
    %182 = vmatpush1.msra.mxu0 0.0
    %183 = vmatprep.subr.mxu0 0.0
    %184 = vmatpush1.msra.mxu0 0.0
    %185 = vmatprep.subr.mxu0 0.0
    %186 = vmatpush1.msra.mxu0 0.0
    %187 = vmatprep.subr.mxu0 0.0
    %188 = vmatpush1.msra.mxu0 0.0
    %189 = vmatprep.subr.mxu0 0.0
    %190 = vmatpush1.msra.mxu0 0.0
    %191 = vmatprep.subr.mxu0 0.0
    %192 = vmatpush1.msra.mxu0 0.0
    %193 = vmatprep.subr.mxu0 0.0
    %194 = vmatpush1.msra.mxu0 0.0
    %195 = vmatprep.subr.mxu0 0.0
    %196 = vmatpush1.msra.mxu0 0.0
    %197 = vmatprep.subr.mxu0 0.0
    %198 = vmatpush1.msra.mxu0 0.0
    %199 = vmatprep.subr.mxu0 0.0
    %200 = vmatpush1.msra.mxu0 0.0
    %201 = vmatprep.subr.mxu0 0.0
    %202 = vmatpush1.msra.mxu0 0.0
    %203 = vmatprep.subr.mxu0 0.0
    %204 = vmatpush1.msra.mxu0 0.0
    %205 = vmatprep.subr.mxu0 0.0
    %206 = vmatpush1.msra.mxu0 0.0
    %207 = vmatprep.subr.mxu0 0.0
    %208 = vmatpush1.msra.mxu0 0.0
    %209 = vmatprep.subr.mxu0 0.0
    %210 = vmatpush1.msra.mxu0 0.0
    %211 = vmatprep.subr.mxu0 0.0
    %212 = vmatpush1.msra.mxu0 0.0
    %213 = vmatprep.subr.mxu0 0.0
    %214 = vmatpush1.msra.mxu0 0.0
    %215 = vmatprep.subr.mxu0 0.0
    %216 = vmatpush1.msra.mxu0 0.0
    %217 = vmatprep.subr.mxu0 0.0
    %218 = vmatpush1.msra.mxu0 0.0
    %219 = vmatprep.subr.mxu0 0.0
    %220 = vmatpush1.msra.mxu0 0.0
    %221 = vmatprep.subr.mxu0 0.0
    %222 = vmatpush1.msra.mxu0 0.0
    %223 = vmatprep.subr.mxu0 0.0
    %224 = vmatpush1.msra.mxu0 0.0
    %225 = vmatprep.subr.mxu0 0.0
    %226 = vmatpush1.msra.mxu0 0.0
    %227 = vmatprep.subr.mxu0 0.0
    %228 = vmatpush1.msra.mxu0 0.0
    %229 = vmatprep.subr.mxu0 0.0
    %230 = vmatpush1.msra.mxu0 0.0
    %231 = vmatprep.subr.mxu0 0.0
    %232 = vmatpush1.msra.mxu0 0.0
    %233 = vmatprep.subr.mxu0 0.0
    %234 = vmatpush1.msra.mxu0 0.0
    %235 = vmatprep.subr.mxu0 0.0
    %236 = vmatpush1.msra.mxu0 0.0
    %237 = vmatprep.mubr.f32.mxu0 0.0
    %238 = vmatmul.mubr.f32.gmra.mrb[0].mxu0 %v171
    %v239 = vpop.f32.mrb[0].mxu0
    %v240 = vadd.f32 0.0, %v239
    %v241 = vpop.f32.mrb[0].mxu0
    %242 = vdwg.mxu0
    %v243 = vadd.f32 %v127, %v240
    %v244 = vxor.u32 %v243, 2147483648
    %v245 = vmul.f32 %v244, 1.442695
    %v246 = vpow.pop %v245
    %v247 = vadd.f32 %v246, 1.0
    %v248 = vrcp.pop %v247
    %v249 = vmul.f32 1.0, %v248
    %v250 = vtanh.pop %v243
    %v251 = vmul.f32 %v249, 0.0
    %253 = vrot.lane.b32.xlu0 %v250, 64
    %v254 = vpop.permute.xlu0 %253
    %v256 = vmul.f32 %v249, %v254
    %258 = vrot.lane.b32.xlu0 %v256, 96
    %v259 = vpop.permute.xlu0 %258
    %v261 = vadd.f32 %v251, %v259
    %v262 = vtanh.pop %v261
    %264 = vrot.lane.b32.xlu0 %v262, 64
    %v265 = vpop.permute.xlu0 %264
    %v267 = vmul.f32 %v249, %v265
    %269 = vrot.lane.b32.xlu0 %v267, 64
    %v270 = vpop.permute.xlu0 %269
    %v271 = vsel %vm169, %v270, 0
    %273 = vmatprep.subr.mxu0 0.0
    %274 = vmatpush1.msra.mxu0 %v165
    %275 = vmatprep.subr.mxu0 0.0
    %276 = vmatpush1.msra.mxu0 %v166
    %277 = vmatprep.subr.mxu0 0.0
    %278 = vmatpush1.msra.mxu0 %v167
    %279 = vmatprep.subr.mxu0 0.0
    %280 = vmatpush1.msra.mxu0 %v168
    %281 = vmatprep.subr.mxu0 0.0
    %282 = vmatpush1.msra.mxu0 0.0
    %283 = vmatprep.subr.mxu0 0.0
    %284 = vmatpush1.msra.mxu0 0.0
    %285 = vmatprep.subr.mxu0 0.0
    %286 = vmatpush1.msra.mxu0 0.0
    %287 = vmatprep.subr.mxu0 0.0
    %288 = vmatpush1.msra.mxu0 0.0
    %289 = vmatprep.subr.mxu0 0.0
    %290 = vmatpush1.msra.mxu0 0.0
    %291 = vmatprep.subr.mxu0 0.0
    %292 = vmatpush1.msra.mxu0 0.0
    %293 = vmatprep.subr.mxu0 0.0
    %294 = vmatpush1.msra.mxu0 0.0
    %295 = vmatprep.subr.mxu0 0.0
    %296 = vmatpush1.msra.mxu0 0.0
    %297 = vmatprep.subr.mxu0 0.0
    %298 = vmatpush1.msra.mxu0 0.0
    %299 = vmatprep.subr.mxu0 0.0
    %300 = vmatpush1.msra.mxu0 0.0
    %301 = vmatprep.subr.mxu0 0.0
    %302 = vmatpush1.msra.mxu0 0.0
    %303 = vmatprep.subr.mxu0 0.0
    %304 = vmatpush1.msra.mxu0 0.0
    %305 = vmatprep.subr.mxu0 0.0
    %306 = vmatpush1.msra.mxu0 0.0
    %307 = vmatprep.subr.mxu0 0.0
    %308 = vmatpush1.msra.mxu0 0.0
    %309 = vmatprep.subr.mxu0 0.0
    %310 = vmatpush1.msra.mxu0 0.0
    %311 = vmatprep.subr.mxu0 0.0
    %312 = vmatpush1.msra.mxu0 0.0
    %313 = vmatprep.subr.mxu0 0.0
    %314 = vmatpush1.msra.mxu0 0.0
    %315 = vmatprep.subr.mxu0 0.0
    %316 = vmatpush1.msra.mxu0 0.0
    %317 = vmatprep.subr.mxu0 0.0
    %318 = vmatpush1.msra.mxu0 0.0
    %319 = vmatprep.subr.mxu0 0.0
    %320 = vmatpush1.msra.mxu0 0.0
    %321 = vmatprep.subr.mxu0 0.0
    %322 = vmatpush1.msra.mxu0 0.0
    %323 = vmatprep.subr.mxu0 0.0
    %324 = vmatpush1.msra.mxu0 0.0
    %325 = vmatprep.subr.mxu0 0.0
    %326 = vmatpush1.msra.mxu0 0.0
    %327 = vmatprep.subr.mxu0 0.0
    %328 = vmatpush1.msra.mxu0 0.0
    %329 = vmatprep.subr.mxu0 0.0
    %330 = vmatpush1.msra.mxu0 0.0
    %331 = vmatprep.subr.mxu0 0.0
    %332 = vmatpush1.msra.mxu0 0.0
    %333 = vmatprep.subr.mxu0 0.0
    %334 = vmatpush1.msra.mxu0 0.0
    %335 = vmatprep.subr.mxu0 0.0
    %336 = vmatpush1.msra.mxu0 0.0
    %337 = vmatprep.mubr.f32.mxu0 0.0
    %338 = vmatmul.mubr.f32.gmra.mrb[0].mxu0 %v271
    %v339 = vpop.f32.mrb[0].mxu0
    %v340 = vadd.f32 0.0, %v339
    %v341 = vpop.f32.mrb[0].mxu0
    %342 = vdwg.mxu0
    %v343 = vadd.f32 %v132, %v340
    %v344 = vxor.u32 %v343, 2147483648
    %v345 = vmul.f32 %v344, 1.442695
    %v346 = vpow.pop %v345
    %v347 = vadd.f32 %v346, 1.0
    %v348 = vrcp.pop %v347
    %v349 = vmul.f32 1.0, %v348
    %v350 = vtanh.pop %v343
    %v351 = vmul.f32 %v349, %v261
    %353 = vrot.lane.b32.xlu0 %v350, 64
    %v354 = vpop.permute.xlu0 %353
    %v356 = vmul.f32 %v349, %v354
    %358 = vrot.lane.b32.xlu0 %v356, 96
    %v359 = vpop.permute.xlu0 %358
    %v361 = vadd.f32 %v351, %v359
    %v362 = vtanh.pop %v361
    %364 = vrot.lane.b32.xlu0 %v362, 64
    %v365 = vpop.permute.xlu0 %364
    %v367 = vmul.f32 %v349, %v365
    %369 = vrot.lane.b32.xlu0 %v367, 64
    %v370 = vpop.permute.xlu0 %369
    %v371 = vsel %vm169, %v370, 0
    %373 = vmatprep.subr.mxu0 0.0
    %374 = vmatpush1.msra.mxu0 %v165
    %375 = vmatprep.subr.mxu0 0.0
    %376 = vmatpush1.msra.mxu0 %v166
    %377 = vmatprep.subr.mxu0 0.0
    %378 = vmatpush1.msra.mxu0 %v167
    %379 = vmatprep.subr.mxu0 0.0
    %380 = vmatpush1.msra.mxu0 %v168
    %381 = vmatprep.subr.mxu0 0.0
    %382 = vmatpush1.msra.mxu0 0.0
    %383 = vmatprep.subr.mxu0 0.0
    %384 = vmatpush1.msra.mxu0 0.0
    %385 = vmatprep.subr.mxu0 0.0
    %386 = vmatpush1.msra.mxu0 0.0
    %387 = vmatprep.subr.mxu0 0.0
    %388 = vmatpush1.msra.mxu0 0.0
    %389 = vmatprep.subr.mxu0 0.0
    %390 = vmatpush1.msra.mxu0 0.0
    %391 = vmatprep.subr.mxu0 0.0
    %392 = vmatpush1.msra.mxu0 0.0
    %393 = vmatprep.subr.mxu0 0.0
    %394 = vmatpush1.msra.mxu0 0.0
    %395 = vmatprep.subr.mxu0 0.0
    %396 = vmatpush1.msra.mxu0 0.0
    %397 = vmatprep.subr.mxu0 0.0
    %398 = vmatpush1.msra.mxu0 0.0
    %399 = vmatprep.subr.mxu0 0.0
    %400 = vmatpush1.msra.mxu0 0.0
    %401 = vmatprep.subr.mxu0 0.0
    %402 = vmatpush1.msra.mxu0 0.0
    %403 = vmatprep.subr.mxu0 0.0
    %404 = vmatpush1.msra.mxu0 0.0
    %405 = vmatprep.subr.mxu0 0.0
    %406 = vmatpush1.msra.mxu0 0.0
    %407 = vmatprep.subr.mxu0 0.0
    %408 = vmatpush1.msra.mxu0 0.0
    %409 = vmatprep.subr.mxu0 0.0
    %410 = vmatpush1.msra.mxu0 0.0
    %411 = vmatprep.subr.mxu0 0.0
    %412 = vmatpush1.msra.mxu0 0.0
    %413 = vmatprep.subr.mxu0 0.0
    %414 = vmatpush1.msra.mxu0 0.0
    %415 = vmatprep.subr.mxu0 0.0
    %416 = vmatpush1.msra.mxu0 0.0
    %417 = vmatprep.subr.mxu0 0.0
    %418 = vmatpush1.msra.mxu0 0.0
    %419 = vmatprep.subr.mxu0 0.0
    %420 = vmatpush1.msra.mxu0 0.0
    %421 = vmatprep.subr.mxu0 0.0
    %422 = vmatpush1.msra.mxu0 0.0
    %423 = vmatprep.subr.mxu0 0.0
    %424 = vmatpush1.msra.mxu0 0.0
    %425 = vmatprep.subr.mxu0 0.0
    %426 = vmatpush1.msra.mxu0 0.0
    %427 = vmatprep.subr.mxu0 0.0
    %428 = vmatpush1.msra.mxu0 0.0
    %429 = vmatprep.subr.mxu0 0.0
    %430 = vmatpush1.msra.mxu0 0.0
    %431 = vmatprep.subr.mxu0 0.0
    %432 = vmatpush1.msra.mxu0 0.0
    %433 = vmatprep.subr.mxu0 0.0
    %434 = vmatpush1.msra.mxu0 0.0
    %435 = vmatprep.subr.mxu0 0.0
    %436 = vmatpush1.msra.mxu0 0.0
    %437 = vmatprep.mubr.f32.mxu0 0.0
    %438 = vmatmul.mubr.f32.gmra.mrb[0].mxu0 %v371
    %v439 = vpop.f32.mrb[0].mxu0
    %v440 = vadd.f32 0.0, %v439
    %v441 = vpop.f32.mrb[0].mxu0
    %442 = vdwg.mxu0
    %v443 = vadd.f32 %v137, %v440
    %v444 = vxor.u32 %v443, 2147483648
    %v445 = vmul.f32 %v444, 1.442695
    %v446 = vpow.pop %v445
    %v447 = vadd.f32 %v446, 1.0
    %v448 = vrcp.pop %v447
    %v449 = vmul.f32 1.0, %v448
    %v450 = vtanh.pop %v443
    %v451 = vmul.f32 %v449, %v361
    %453 = vrot.lane.b32.xlu0 %v450, 64
    %v454 = vpop.permute.xlu0 %453
    %v456 = vmul.f32 %v449, %v454
    %458 = vrot.lane.b32.xlu0 %v456, 96
    %v459 = vpop.permute.xlu0 %458
    %v461 = vadd.f32 %v451, %v459
    %v462 = vtanh.pop %v461
    %464 = vrot.lane.b32.xlu0 %v462, 64
    %v465 = vpop.permute.xlu0 %464
    %v467 = vmul.f32 %v449, %v465
    %469 = vrot.lane.b32.xlu0 %v467, 64
    %v470 = vpop.permute.xlu0 %469
    %v471 = vsel %vm169, %v470, 0
    %473 = vmatprep.subr.mxu0 0.0
    %474 = vmatpush1.msra.mxu0 %v165
    %475 = vmatprep.subr.mxu0 0.0
    %476 = vmatpush1.msra.mxu0 %v166
    %477 = vmatprep.subr.mxu0 0.0
    %478 = vmatpush1.msra.mxu0 %v167
    %479 = vmatprep.subr.mxu0 0.0
    %480 = vmatpush1.msra.mxu0 %v168
    %481 = vmatprep.subr.mxu0 0.0
    %482 = vmatpush1.msra.mxu0 0.0
    %483 = vmatprep.subr.mxu0 0.0
    %484 = vmatpush1.msra.mxu0 0.0
    %485 = vmatprep.subr.mxu0 0.0
    %486 = vmatpush1.msra.mxu0 0.0
    %487 = vmatprep.subr.mxu0 0.0
    %488 = vmatpush1.msra.mxu0 0.0
    %489 = vmatprep.subr.mxu0 0.0
    %490 = vmatpush1.msra.mxu0 0.0
    %491 = vmatprep.subr.mxu0 0.0
    %492 = vmatpush1.msra.mxu0 0.0
    %493 = vmatprep.subr.mxu0 0.0
    %494 = vmatpush1.msra.mxu0 0.0
    %495 = vmatprep.subr.mxu0 0.0
    %496 = vmatpush1.msra.mxu0 0.0
    %497 = vmatprep.subr.mxu0 0.0
    %498 = vmatpush1.msra.mxu0 0.0
    %499 = vmatprep.subr.mxu0 0.0
    %500 = vmatpush1.msra.mxu0 0.0
    %501 = vmatprep.subr.mxu0 0.0
    %502 = vmatpush1.msra.mxu0 0.0
    %503 = vmatprep.subr.mxu0 0.0
    %504 = vmatpush1.msra.mxu0 0.0
    %505 = vmatprep.subr.mxu0 0.0
    %506 = vmatpush1.msra.mxu0 0.0
    %507 = vmatprep.subr.mxu0 0.0
    %508 = vmatpush1.msra.mxu0 0.0
    %509 = vmatprep.subr.mxu0 0.0
    %510 = vmatpush1.msra.mxu0 0.0
    %511 = vmatprep.subr.mxu0 0.0
    %512 = vmatpush1.msra.mxu0 0.0
    %513 = vmatprep.subr.mxu0 0.0
    %514 = vmatpush1.msra.mxu0 0.0
    %515 = vmatprep.subr.mxu0 0.0
    %516 = vmatpush1.msra.mxu0 0.0
    %517 = vmatprep.subr.mxu0 0.0
    %518 = vmatpush1.msra.mxu0 0.0
    %519 = vmatprep.subr.mxu0 0.0
    %520 = vmatpush1.msra.mxu0 0.0
    %521 = vmatprep.subr.mxu0 0.0
    %522 = vmatpush1.msra.mxu0 0.0
    %523 = vmatprep.subr.mxu0 0.0
    %524 = vmatpush1.msra.mxu0 0.0
    %525 = vmatprep.subr.mxu0 0.0
    %526 = vmatpush1.msra.mxu0 0.0
    %527 = vmatprep.subr.mxu0 0.0
    %528 = vmatpush1.msra.mxu0 0.0
    %529 = vmatprep.subr.mxu0 0.0
    %530 = vmatpush1.msra.mxu0 0.0
    %531 = vmatprep.subr.mxu0 0.0
    %532 = vmatpush1.msra.mxu0 0.0
    %533 = vmatprep.subr.mxu0 0.0
    %534 = vmatpush1.msra.mxu0 0.0
    %535 = vmatprep.subr.mxu0 0.0
    %536 = vmatpush1.msra.mxu0 0.0
    %537 = vmatprep.mubr.f32.mxu0 0.0
    %538 = vmatmul.mubr.f32.gmra.mrb[0].mxu0 %v471
    %v539 = vpop.f32.mrb[0].mxu0
    %v540 = vadd.f32 0.0, %v539
    %v541 = vpop.f32.mrb[0].mxu0
    %542 = vdwg.mxu0
    %v543 = vadd.f32 %v142, %v540
    %v544 = vxor.u32 %v543, 2147483648
    %v545 = vmul.f32 %v544, 1.442695
    %v546 = vpow.pop %v545
    %v547 = vadd.f32 %v546, 1.0
    %v548 = vrcp.pop %v547
    %v549 = vmul.f32 1.0, %v548
    %v550 = vtanh.pop %v543
    %v551 = vmul.f32 %v549, %v461
    %553 = vrot.lane.b32.xlu0 %v550, 64
    %v554 = vpop.permute.xlu0 %553
    %v556 = vmul.f32 %v549, %v554
    %558 = vrot.lane.b32.xlu0 %v556, 96
    %v559 = vpop.permute.xlu0 %558
    %v561 = vadd.f32 %v551, %v559
    %v562 = vtanh.pop %v561
    %564 = vrot.lane.b32.xlu0 %v562, 64
    %v565 = vpop.permute.xlu0 %564
    %v567 = vmul.f32 %v549, %v565
    %569 = vrot.lane.b32.xlu0 %v567, 64
    %v570 = vpop.permute.xlu0 %569
    %v571 = vsel %vm169, %v570, 0
    %573 = vmatprep.subr.mxu0 0.0
    %574 = vmatpush1.msra.mxu0 %v165
    %575 = vmatprep.subr.mxu0 0.0
    %576 = vmatpush1.msra.mxu0 %v166
    %577 = vmatprep.subr.mxu0 0.0
    %578 = vmatpush1.msra.mxu0 %v167
    %579 = vmatprep.subr.mxu0 0.0
    %580 = vmatpush1.msra.mxu0 %v168
    %581 = vmatprep.subr.mxu0 0.0
    %582 = vmatpush1.msra.mxu0 0.0
    %583 = vmatprep.subr.mxu0 0.0
    %584 = vmatpush1.msra.mxu0 0.0
    %585 = vmatprep.subr.mxu0 0.0
    %586 = vmatpush1.msra.mxu0 0.0
    %587 = vmatprep.subr.mxu0 0.0
    %588 = vmatpush1.msra.mxu0 0.0
    %589 = vmatprep.subr.mxu0 0.0
    %590 = vmatpush1.msra.mxu0 0.0
    %591 = vmatprep.subr.mxu0 0.0
    %592 = vmatpush1.msra.mxu0 0.0
    %593 = vmatprep.subr.mxu0 0.0
    %594 = vmatpush1.msra.mxu0 0.0
    %595 = vmatprep.subr.mxu0 0.0
    %596 = vmatpush1.msra.mxu0 0.0
    %597 = vmatprep.subr.mxu0 0.0
    %598 = vmatpush1.msra.mxu0 0.0
    %599 = vmatprep.subr.mxu0 0.0
    %600 = vmatpush1.msra.mxu0 0.0
    %601 = vmatprep.subr.mxu0 0.0
    %602 = vmatpush1.msra.mxu0 0.0
    %603 = vmatprep.subr.mxu0 0.0
    %604 = vmatpush1.msra.mxu0 0.0
    %605 = vmatprep.subr.mxu0 0.0
    %606 = vmatpush1.msra.mxu0 0.0
    %607 = vmatprep.subr.mxu0 0.0
    %608 = vmatpush1.msra.mxu0 0.0
    %609 = vmatprep.subr.mxu0 0.0
    %610 = vmatpush1.msra.mxu0 0.0
    %611 = vmatprep.subr.mxu0 0.0
    %612 = vmatpush1.msra.mxu0 0.0
    %613 = vmatprep.subr.mxu0 0.0
    %614 = vmatpush1.msra.mxu0 0.0
    %615 = vmatprep.subr.mxu0 0.0
    %616 = vmatpush1.msra.mxu0 0.0
    %617 = vmatprep.subr.mxu0 0.0
    %618 = vmatpush1.msra.mxu0 0.0
    %619 = vmatprep.subr.mxu0 0.0
    %620 = vmatpush1.msra.mxu0 0.0
    %621 = vmatprep.subr.mxu0 0.0
    %622 = vmatpush1.msra.mxu0 0.0
    %623 = vmatprep.subr.mxu0 0.0
    %624 = vmatpush1.msra.mxu0 0.0
    %625 = vmatprep.subr.mxu0 0.0
    %626 = vmatpush1.msra.mxu0 0.0
    %627 = vmatprep.subr.mxu0 0.0
    %628 = vmatpush1.msra.mxu0 0.0
    %629 = vmatprep.subr.mxu0 0.0
    %630 = vmatpush1.msra.mxu0 0.0
    %631 = vmatprep.subr.mxu0 0.0
    %632 = vmatpush1.msra.mxu0 0.0
    %633 = vmatprep.subr.mxu0 0.0
    %634 = vmatpush1.msra.mxu0 0.0
    %635 = vmatprep.subr.mxu0 0.0
    %636 = vmatpush1.msra.mxu0 0.0
    %637 = vmatprep.mubr.f32.mxu0 0.0
    %638 = vmatmul.mubr.f32.gmra.mrb[0].mxu0 %v571
    %v639 = vpop.f32.mrb[0].mxu0
    %v640 = vadd.f32 0.0, %v639
    %v641 = vpop.f32.mrb[0].mxu0
    %642 = vdwg.mxu0
    %v643 = vadd.f32 %v147, %v640
    %v644 = vxor.u32 %v643, 2147483648
    %v645 = vmul.f32 %v644, 1.442695
    %v646 = vpow.pop %v645
    %v647 = vadd.f32 %v646, 1.0
    %v648 = vrcp.pop %v647
    %v649 = vmul.f32 1.0, %v648
    %v650 = vtanh.pop %v643
    %v651 = vmul.f32 %v649, %v561
    %653 = vrot.lane.b32.xlu0 %v650, 64
    %v654 = vpop.permute.xlu0 %653
    %v656 = vmul.f32 %v649, %v654
    %658 = vrot.lane.b32.xlu0 %v656, 96
    %v659 = vpop.permute.xlu0 %658
    %v661 = vadd.f32 %v651, %v659
    %v662 = vtanh.pop %v661
    %664 = vrot.lane.b32.xlu0 %v662, 64
    %v665 = vpop.permute.xlu0 %664
    %v667 = vmul.f32 %v649, %v665
    %669 = vrot.lane.b32.xlu0 %v667, 64
    %v670 = vpop.permute.xlu0 %669
    %v671 = vsel %vm169, %v670, 0
    %673 = vmatprep.subr.mxu0 0.0
    %674 = vmatpush1.msra.mxu0 %v165
    %675 = vmatprep.subr.mxu0 0.0
    %676 = vmatpush1.msra.mxu0 %v166
    %677 = vmatprep.subr.mxu0 0.0
    %678 = vmatpush1.msra.mxu0 %v167
    %679 = vmatprep.subr.mxu0 0.0
    %680 = vmatpush1.msra.mxu0 %v168
    %681 = vmatprep.subr.mxu0 0.0
    %682 = vmatpush1.msra.mxu0 0.0
    %683 = vmatprep.subr.mxu0 0.0
    %684 = vmatpush1.msra.mxu0 0.0
    %685 = vmatprep.subr.mxu0 0.0
    %686 = vmatpush1.msra.mxu0 0.0
    %687 = vmatprep.subr.mxu0 0.0
    %688 = vmatpush1.msra.mxu0 0.0
    %689 = vmatprep.subr.mxu0 0.0
    %690 = vmatpush1.msra.mxu0 0.0
    %691 = vmatprep.subr.mxu0 0.0
    %692 = vmatpush1.msra.mxu0 0.0
    %693 = vmatprep.subr.mxu0 0.0
    %694 = vmatpush1.msra.mxu0 0.0
    %695 = vmatprep.subr.mxu0 0.0
    %696 = vmatpush1.msra.mxu0 0.0
    %697 = vmatprep.subr.mxu0 0.0
    %698 = vmatpush1.msra.mxu0 0.0
    %699 = vmatprep.subr.mxu0 0.0
    %700 = vmatpush1.msra.mxu0 0.0
    %701 = vmatprep.subr.mxu0 0.0
    %702 = vmatpush1.msra.mxu0 0.0
    %703 = vmatprep.subr.mxu0 0.0
    %704 = vmatpush1.msra.mxu0 0.0
    %705 = vmatprep.subr.mxu0 0.0
    %706 = vmatpush1.msra.mxu0 0.0
    %707 = vmatprep.subr.mxu0 0.0
    %708 = vmatpush1.msra.mxu0 0.0
    %709 = vmatprep.subr.mxu0 0.0
    %710 = vmatpush1.msra.mxu0 0.0
    %711 = vmatprep.subr.mxu0 0.0
    %712 = vmatpush1.msra.mxu0 0.0
    %713 = vmatprep.subr.mxu0 0.0
    %714 = vmatpush1.msra.mxu0 0.0
    %715 = vmatprep.subr.mxu0 0.0
    %716 = vmatpush1.msra.mxu0 0.0
    %717 = vmatprep.subr.mxu0 0.0
    %718 = vmatpush1.msra.mxu0 0.0
    %719 = vmatprep.subr.mxu0 0.0
    %720 = vmatpush1.msra.mxu0 0.0
    %721 = vmatprep.subr.mxu0 0.0
    %722 = vmatpush1.msra.mxu0 0.0
    %723 = vmatprep.subr.mxu0 0.0
    %724 = vmatpush1.msra.mxu0 0.0
    %725 = vmatprep.subr.mxu0 0.0
    %726 = vmatpush1.msra.mxu0 0.0
    %727 = vmatprep.subr.mxu0 0.0
    %728 = vmatpush1.msra.mxu0 0.0
    %729 = vmatprep.subr.mxu0 0.0
    %730 = vmatpush1.msra.mxu0 0.0
    %731 = vmatprep.subr.mxu0 0.0
    %732 = vmatpush1.msra.mxu0 0.0
    %733 = vmatprep.subr.mxu0 0.0
    %734 = vmatpush1.msra.mxu0 0.0
    %735 = vmatprep.subr.mxu0 0.0
    %736 = vmatpush1.msra.mxu0 0.0
    %737 = vmatprep.mubr.f32.mxu0 0.0
    %738 = vmatmul.mubr.f32.gmra.mrb[0].mxu0 %v671
    %v739 = vpop.f32.mrb[0].mxu0
    %v740 = vadd.f32 0.0, %v739
    %v741 = vpop.f32.mrb[0].mxu0
    %742 = vdwg.mxu0
    %v743 = vadd.f32 %v152, %v740
    %v744 = vxor.u32 %v743, 2147483648
    %v745 = vmul.f32 %v744, 1.442695
    %v746 = vpow.pop %v745
    %v747 = vadd.f32 %v746, 1.0
    %v748 = vrcp.pop %v747
    %v749 = vmul.f32 1.0, %v748
    %v750 = vtanh.pop %v743
    %v751 = vmul.f32 %v749, %v661
    %753 = vrot.lane.b32.xlu0 %v750, 64
    %v754 = vpop.permute.xlu0 %753
    %v756 = vmul.f32 %v749, %v754
    %758 = vrot.lane.b32.xlu0 %v756, 96
    %v759 = vpop.permute.xlu0 %758
    %v761 = vadd.f32 %v751, %v759
    %v762 = vtanh.pop %v761
    %764 = vrot.lane.b32.xlu0 %v762, 64
    %v765 = vpop.permute.xlu0 %764
    %v767 = vmul.f32 %v749, %v765
    %769 = vrot.lane.b32.xlu0 %v767, 64
    %v770 = vpop.permute.xlu0 %769
    %v771 = vsel %vm169, %v770, 0
    %773 = vmatprep.subr.mxu0 0.0
    %774 = vmatpush1.msra.mxu0 %v165
    %775 = vmatprep.subr.mxu0 0.0
    %776 = vmatpush1.msra.mxu0 %v166
    %777 = vmatprep.subr.mxu0 0.0
    %778 = vmatpush1.msra.mxu0 %v167
    %779 = vmatprep.subr.mxu0 0.0
    %780 = vmatpush1.msra.mxu0 %v168
    %781 = vmatprep.subr.mxu0 0.0
    %782 = vmatpush1.msra.mxu0 0.0
    %783 = vmatprep.subr.mxu0 0.0
    %784 = vmatpush1.msra.mxu0 0.0
    %785 = vmatprep.subr.mxu0 0.0
    %786 = vmatpush1.msra.mxu0 0.0
    %787 = vmatprep.subr.mxu0 0.0
    %788 = vmatpush1.msra.mxu0 0.0
    %789 = vmatprep.subr.mxu0 0.0
    %790 = vmatpush1.msra.mxu0 0.0
    %791 = vmatprep.subr.mxu0 0.0
    %792 = vmatpush1.msra.mxu0 0.0
    %793 = vmatprep.subr.mxu0 0.0
    %794 = vmatpush1.msra.mxu0 0.0
    %795 = vmatprep.subr.mxu0 0.0
    %796 = vmatpush1.msra.mxu0 0.0
    %797 = vmatprep.subr.mxu0 0.0
    %798 = vmatpush1.msra.mxu0 0.0
    %799 = vmatprep.subr.mxu0 0.0
    %800 = vmatpush1.msra.mxu0 0.0
    %801 = vmatprep.subr.mxu0 0.0
    %802 = vmatpush1.msra.mxu0 0.0
    %803 = vmatprep.subr.mxu0 0.0
    %804 = vmatpush1.msra.mxu0 0.0
    %805 = vmatprep.subr.mxu0 0.0
    %806 = vmatpush1.msra.mxu0 0.0
    %807 = vmatprep.subr.mxu0 0.0
    %808 = vmatpush1.msra.mxu0 0.0
    %809 = vmatprep.subr.mxu0 0.0
    %810 = vmatpush1.msra.mxu0 0.0
    %811 = vmatprep.subr.mxu0 0.0
    %812 = vmatpush1.msra.mxu0 0.0
    %813 = vmatprep.subr.mxu0 0.0
    %814 = vmatpush1.msra.mxu0 0.0
    %815 = vmatprep.subr.mxu0 0.0
    %816 = vmatpush1.msra.mxu0 0.0
    %817 = vmatprep.subr.mxu0 0.0
    %818 = vmatpush1.msra.mxu0 0.0
    %819 = vmatprep.subr.mxu0 0.0
    %820 = vmatpush1.msra.mxu0 0.0
    %821 = vmatprep.subr.mxu0 0.0
    %822 = vmatpush1.msra.mxu0 0.0
    %823 = vmatprep.subr.mxu0 0.0
    %824 = vmatpush1.msra.mxu0 0.0
    %825 = vmatprep.subr.mxu0 0.0
    %826 = vmatpush1.msra.mxu0 0.0
    %827 = vmatprep.subr.mxu0 0.0
    %828 = vmatpush1.msra.mxu0 0.0
    %829 = vmatprep.subr.mxu0 0.0
    %830 = vmatpush1.msra.mxu0 0.0
    %831 = vmatprep.subr.mxu0 0.0
    %832 = vmatpush1.msra.mxu0 0.0
    %833 = vmatprep.subr.mxu0 0.0
    %834 = vmatpush1.msra.mxu0 0.0
    %835 = vmatprep.subr.mxu0 0.0
    %836 = vmatpush1.msra.mxu0 0.0
    %837 = vmatprep.mubr.f32.mxu0 0.0
    %838 = vmatmul.mubr.f32.gmra.mrb[0].mxu0 %v771
    %v839 = vpop.f32.mrb[0].mxu0
    %v840 = vadd.f32 0.0, %v839
    %v841 = vpop.f32.mrb[0].mxu0
    %842 = vdwg.mxu0
    %v843 = vadd.f32 %v157, %v840
    %v844 = vxor.u32 %v843, 2147483648
    %v845 = vmul.f32 %v844, 1.442695
    %v846 = vpow.pop %v845
    %v847 = vadd.f32 %v846, 1.0
    %v848 = vrcp.pop %v847
    %v849 = vmul.f32 1.0, %v848
    %v850 = vtanh.pop %v843
    %v851 = vmul.f32 %v849, %v761
    %853 = vrot.lane.b32.xlu0 %v850, 64
    %v854 = vpop.permute.xlu0 %853
    %v856 = vmul.f32 %v849, %v854
    %858 = vrot.lane.b32.xlu0 %v856, 96
    %v859 = vpop.permute.xlu0 %858
    %v861 = vadd.f32 %v851, %v859
    %v862 = vtanh.pop %v861
    %864 = vrot.lane.b32.xlu0 %v862, 64
    %v865 = vpop.permute.xlu0 %864
    %v867 = vmul.f32 %v849, %v865
    %869 = vrot.lane.b32.xlu0 %v867, 64
    %v870 = vpop.permute.xlu0 %869
    %v871 = vsel %vm169, %v870, 0
    %873 = vmatprep.subr.mxu0 0.0
    %874 = vmatpush1.msra.mxu0 %v165
    %875 = vmatprep.subr.mxu0 0.0
    %876 = vmatpush1.msra.mxu0 %v166
    %877 = vmatprep.subr.mxu0 0.0
    %878 = vmatpush1.msra.mxu0 %v167
    %879 = vmatprep.subr.mxu0 0.0
    %880 = vmatpush1.msra.mxu0 %v168
    %881 = vmatprep.subr.mxu0 0.0
    %882 = vmatpush1.msra.mxu0 0.0
    %883 = vmatprep.subr.mxu0 0.0
    %884 = vmatpush1.msra.mxu0 0.0
    %885 = vmatprep.subr.mxu0 0.0
    %886 = vmatpush1.msra.mxu0 0.0
    %887 = vmatprep.subr.mxu0 0.0
    %888 = vmatpush1.msra.mxu0 0.0
    %889 = vmatprep.subr.mxu0 0.0
    %890 = vmatpush1.msra.mxu0 0.0
    %891 = vmatprep.subr.mxu0 0.0
    %892 = vmatpush1.msra.mxu0 0.0
    %893 = vmatprep.subr.mxu0 0.0
    %894 = vmatpush1.msra.mxu0 0.0
    %895 = vmatprep.subr.mxu0 0.0
    %896 = vmatpush1.msra.mxu0 0.0
    %897 = vmatprep.subr.mxu0 0.0
    %898 = vmatpush1.msra.mxu0 0.0
    %899 = vmatprep.subr.mxu0 0.0
    %900 = vmatpush1.msra.mxu0 0.0
    %901 = vmatprep.subr.mxu0 0.0
    %902 = vmatpush1.msra.mxu0 0.0
    %903 = vmatprep.subr.mxu0 0.0
    %904 = vmatpush1.msra.mxu0 0.0
    %905 = vmatprep.subr.mxu0 0.0
    %906 = vmatpush1.msra.mxu0 0.0
    %907 = vmatprep.subr.mxu0 0.0
    %908 = vmatpush1.msra.mxu0 0.0
    %909 = vmatprep.subr.mxu0 0.0
    %910 = vmatpush1.msra.mxu0 0.0
    %911 = vmatprep.subr.mxu0 0.0
    %912 = vmatpush1.msra.mxu0 0.0
    %913 = vmatprep.subr.mxu0 0.0
    %914 = vmatpush1.msra.mxu0 0.0
    %915 = vmatprep.subr.mxu0 0.0
    %916 = vmatpush1.msra.mxu0 0.0
    %917 = vmatprep.subr.mxu0 0.0
    %918 = vmatpush1.msra.mxu0 0.0
    %919 = vmatprep.subr.mxu0 0.0
    %920 = vmatpush1.msra.mxu0 0.0
    %921 = vmatprep.subr.mxu0 0.0
    %922 = vmatpush1.msra.mxu0 0.0
    %923 = vmatprep.subr.mxu0 0.0
    %924 = vmatpush1.msra.mxu0 0.0
    %925 = vmatprep.subr.mxu0 0.0
    %926 = vmatpush1.msra.mxu0 0.0
    %927 = vmatprep.subr.mxu0 0.0
    %928 = vmatpush1.msra.mxu0 0.0
    %929 = vmatprep.subr.mxu0 0.0
    %930 = vmatpush1.msra.mxu0 0.0
    %931 = vmatprep.subr.mxu0 0.0
    %932 = vmatpush1.msra.mxu0 0.0
    %933 = vmatprep.subr.mxu0 0.0
    %934 = vmatpush1.msra.mxu0 0.0
    %935 = vmatprep.subr.mxu0 0.0
    %936 = vmatpush1.msra.mxu0 0.0
    %937 = vmatprep.mubr.f32.mxu0 0.0
    %938 = vmatmul.mubr.f32.gmra.mrb[0].mxu0 %v871
    %v939 = vpop.f32.mrb[0].mxu0
    %v940 = vadd.f32 0.0, %v939
    %v941 = vpop.f32.mrb[0].mxu0
    %942 = vdwg.mxu0
    %v943 = vadd.f32 %v162, %v940
    %v944 = vxor.u32 %v943, 2147483648
    %v945 = vmul.f32 %v944, 1.442695
    %v946 = vpow.pop %v945
    %v947 = vadd.f32 %v946, 1.0
    %v948 = vrcp.pop %v947
    %v949 = vmul.f32 1.0, %v948
    %v950 = vtanh.pop %v943
    %v951 = vmul.f32 %v949, %v861
    %953 = vrot.lane.b32.xlu0 %v950, 64
    %v954 = vpop.permute.xlu0 %953
    %v956 = vmul.f32 %v949, %v954
    %958 = vrot.lane.b32.xlu0 %v956, 96
    %v959 = vpop.permute.xlu0 %958
    %v961 = vadd.f32 %v951, %v959
    %v962 = vld [vmem:[#allocation2 + $0x28] sm:$0xff]
    %v963 = vld [vmem:[#allocation2 + $0x30] sm:$0xff]
    %v964 = vld [vmem:[#allocation2 + $0x38] sm:$0xff]
    %v965 = vld [vmem:[#allocation2 + $0x40] sm:$0xff]
    %v966 = vld [vmem:[#allocation2 + $0x48] sm:$0x1]
    %v967 = vlaneseq
    %v968 = vshrl.u32 %v967, 7
    %v969 = vsub.s32 0, %v968
    %v970 = vrot.slane %v966, %v969
    %v972 = vsel %vm169, %v961, 0
    %974 = vmatprep.subr.mxu0 0.0
    %975 = vmatpush1.msra.mxu0 %v962
    %976 = vmatprep.subr.mxu0 0.0
    %977 = vmatpush1.msra.mxu0 %v963
    %978 = vmatprep.subr.mxu0 0.0
    %979 = vmatpush1.msra.mxu0 %v964
    %980 = vmatprep.subr.mxu0 0.0
    %981 = vmatpush1.msra.mxu0 %v965
    %982 = vmatprep.subr.mxu0 0.0
    %983 = vmatpush1.msra.mxu0 0.0
    %984 = vmatprep.subr.mxu0 0.0
    %985 = vmatpush1.msra.mxu0 0.0
    %986 = vmatprep.subr.mxu0 0.0
    %987 = vmatpush1.msra.mxu0 0.0
    %988 = vmatprep.subr.mxu0 0.0
    %989 = vmatpush1.msra.mxu0 0.0
    %990 = vmatprep.subr.mxu0 0.0
    %991 = vmatpush1.msra.mxu0 0.0
    %992 = vmatprep.subr.mxu0 0.0
    %993 = vmatpush1.msra.mxu0 0.0
    %994 = vmatprep.subr.mxu0 0.0
    %995 = vmatpush1.msra.mxu0 0.0
    %996 = vmatprep.subr.mxu0 0.0
    %997 = vmatpush1.msra.mxu0 0.0
    %998 = vmatprep.subr.mxu0 0.0
    %999 = vmatpush1.msra.mxu0 0.0
    %1000 = vmatprep.subr.mxu0 0.0
    %1001 = vmatpush1.msra.mxu0 0.0
    %1002 = vmatprep.subr.mxu0 0.0
    %1003 = vmatpush1.msra.mxu0 0.0
    %1004 = vmatprep.subr.mxu0 0.0
    %1005 = vmatpush1.msra.mxu0 0.0
    %1006 = vmatprep.subr.mxu0 0.0
    %1007 = vmatpush1.msra.mxu0 0.0
    %1008 = vmatprep.subr.mxu0 0.0
    %1009 = vmatpush1.msra.mxu0 0.0
    %1010 = vmatprep.subr.mxu0 0.0
    %1011 = vmatpush1.msra.mxu0 0.0
    %1012 = vmatprep.subr.mxu0 0.0
    %1013 = vmatpush1.msra.mxu0 0.0
    %1014 = vmatprep.subr.mxu0 0.0
    %1015 = vmatpush1.msra.mxu0 0.0
    %1016 = vmatprep.subr.mxu0 0.0
    %1017 = vmatpush1.msra.mxu0 0.0
    %1018 = vmatprep.subr.mxu0 0.0
    %1019 = vmatpush1.msra.mxu0 0.0
    %1020 = vmatprep.subr.mxu0 0.0
    %1021 = vmatpush1.msra.mxu0 0.0
    %1022 = vmatprep.subr.mxu0 0.0
    %1023 = vmatpush1.msra.mxu0 0.0
    %1024 = vmatprep.subr.mxu0 0.0
    %1025 = vmatpush1.msra.mxu0 0.0
    %1026 = vmatprep.subr.mxu0 0.0
    %1027 = vmatpush1.msra.mxu0 0.0
    %1028 = vmatprep.subr.mxu0 0.0
    %1029 = vmatpush1.msra.mxu0 0.0
    %1030 = vmatprep.subr.mxu0 0.0
    %1031 = vmatpush1.msra.mxu0 0.0
    %1032 = vmatprep.subr.mxu0 0.0
    %1033 = vmatpush1.msra.mxu0 0.0
    %1034 = vmatprep.subr.mxu0 0.0
    %1035 = vmatpush1.msra.mxu0 0.0
    %1036 = vmatprep.subr.mxu0 0.0
    %1037 = vmatpush1.msra.mxu0 0.0
    %1038 = vmatprep.mubr.f32.mxu0 0.0
    %1039 = vmatmul.mubr.f32.gmra.mrb[0].mxu0 %v972
    %v1040 = vpop.f32.mrb[0].mxu0
    %v1041 = vadd.f32 %v970, %v1040
    %v1042 = vpop.f32.mrb[0].mxu0
    %1043 = vdwg.mxu0
    %vm1044 = vcmask 9216
    %1045 = vst.msk [vmem:[#allocation5] sm:$0x3] %vm1044, %v1041
    // Predicated region
    $region14: #{tpu_custom_call.1} parent=1 // pred_check
      _
    $region15: #{tpu_custom_call.1} parent=1 // pred_check_branch
      %1047 = sbr.rel (0) target = $region17
    $region16: #{tpu_custom_call.1} parent=1 // pred_region
      %s1049 = ssub.s32 32, 32
      %1050 = vsyncadd [#allocation4], %s1049
      %s1052 = sshll.u32 [#allocation5], 4
      %s1053 = int_to_ptr.vmem [resolvable:$true] %s1052
      %1055 = dma.vmem_to_hbm [thread:$0]  %s1053, 32, %s2, [#allocation4]
    $region17: #{tpu_custom_call.1} parent=1 // pred_fallthru
      _
    // Predicated region
    $region18: #{tpu_custom_call.1} parent=1 // pred_check
      _
    $region19: #{tpu_custom_call.1} parent=1 // pred_check_branch
      %1057 = sbr.rel (0) target = $region21
    $region20: #{tpu_custom_call.1} parent=1 // pred_region
      %1058 = dma.done [#allocation4], 32
    $region21: #{tpu_custom_call.1} parent=1 // pred_fallthru
      _
    %1059 = vsyncpa [#allocation3], 1
    %1060 = vsyncpa [#allocation4], 1

</llo_original>
